<compile_context>
chip_gen: v5e
topology: v5e:2x2
jax: 0.10.0
libtpu: 0.0.40
codegen_flags: <defaults>
</compile_context>

<pallas_src>
import jax
import jax.numpy as jnp
from jax.experimental import pallas as pl
from jax.experimental.pallas import tpu as pltpu

# ---- module hyperparameters (small, deterministic) -------------------------
INPUT_SIZE = 8
SPLIT_SIZE = 4
HIDDEN_SIZE = 32
N_HIDDEN = 1            # depth of extra hidden layers
COND_LABEL_SIZE = None  # y=None path
ALPHA = 0.6

D2 = INPUT_SIZE - SPLIT_SIZE                                 # size of x2 / s / t
NET_IN = SPLIT_SIZE + (COND_LABEL_SIZE or 0)                 # first linear in
H0_OUT = HIDDEN_SIZE + SPLIT_SIZE + (COND_LABEL_SIZE or 0)   # first linear out

LANE = 128


def _round_up(a, b):
    return ((a + b - 1) // b) * b


# ---------------------------------------------------------------------------
# Kernel: one batch tile per grid step, everything in the (features, batch)
# lane-dense layout.
# ---------------------------------------------------------------------------
def affine_coupling_kernel(
    xT_ref,                       # (INPUT_SIZE, TILE_N)
    w0_ref, b0_ref,               # (H0_OUT, NET_IN), (H0_OUT, 1)
    w1_ref, b1_ref,               # (HIDDEN, H0_OUT),  (HIDDEN, 1)
    w2_ref, b2_ref,               # (HIDDEN, HIDDEN),  (HIDDEN, 1)
    w3_ref, b3_ref,               # (2*D2, HIDDEN),    (2*D2, 1)
    log_beta_ref,                 # (D2, 1)
    outT_ref,                     # (INPUT_SIZE, TILE_N)
    logdet_ref,                   # (1, TILE_N)
):
    xT = xT_ref[...]
    x1 = xT[:SPLIT_SIZE, :]                       # (SPLIT_SIZE, TILE_N)
    x2 = xT[SPLIT_SIZE:, :]                       # (D2, TILE_N)

    # MLP: Lin0 -> ReLU -> Lin1 -> ReLU -> Lin2 -> ReLU -> Lin3
    # Weight is the stationary (out, in) operand; batch tile fills the MXU
    # output (lane) dimension.  K is small (4..36) by construction -- no padding.
    h = jnp.dot(w0_ref[...], x1, preferred_element_type=jnp.float32) + b0_ref[...]
    h = jnp.maximum(h, 0.0)
    h = jnp.dot(w1_ref[...], h, preferred_element_type=jnp.float32) + b1_ref[...]
    h = jnp.maximum(h, 0.0)
    h = jnp.dot(w2_ref[...], h, preferred_element_type=jnp.float32) + b2_ref[...]
    h = jnp.maximum(h, 0.0)
    h = jnp.dot(w3_ref[...], h, preferred_element_type=jnp.float32) + b3_ref[...]

    s = h[:D2, :]                                 # (D2, TILE_N)
    t = h[D2:, :]                                 # (D2, TILE_N)
    tanh_s = jnp.tanh(s)
    tanh_t = jnp.tanh(t)

    # beta computed once per grid step; tiny (D2, 1) value broadcast over lanes.
    beta = jnp.exp(jnp.clip(log_beta_ref[...], -5.0, 5.0))   # (D2, 1)

    u2 = x2 + (ALPHA * x2 * tanh_s + beta * tanh_t)          # (D2, TILE_N)

    # Write the two halves directly (no concatenate temporary).
    outT_ref[:SPLIT_SIZE, :] = x1
    outT_ref[SPLIT_SIZE:, :] = u2
    # Lane-dense logdet store: (1, TILE_N); sublane reduce goes to the XLU.
    logdet_ref[...] = jnp.sum(jnp.log(1.0 + ALPHA * tanh_s), axis=0, keepdims=True)


# ---------------------------------------------------------------------------
# Wrapper: transpose / pad in plain JAX, tile the batch dimension.
# ---------------------------------------------------------------------------
def affine_coupling_forward(x, params, *, tile_n=2048):
    """x: (N, INPUT_SIZE) f32.  params: dict with (out, in) weights, (out, 1) biases,
    (D2, 1) log_beta.  Returns (out (N, INPUT_SIZE), logdet (N,))."""
    n, d = x.shape
    assert d == INPUT_SIZE
    assert tile_n % LANE == 0

    # Effective tile: multiple of 128, no bigger than needed for the batch.
    tile = min(tile_n, _round_up(n, LANE))
    n_pad = _round_up(n, tile)
    grid = (n_pad // tile,)

    # Layout plumbing in the wrapper: pad the batch and transpose to (features, batch).
    x_pad = jnp.pad(x, ((0, n_pad - n), (0, 0)))
    xT = x_pad.T                                            # (INPUT_SIZE, n_pad)

    # Advisory cost estimate for XLA's scheduler (per-row MLP FLOPs + elementwise).
    mlp_flops_per_row = 2 * (NET_IN * H0_OUT + H0_OUT * HIDDEN_SIZE
                             + HIDDEN_SIZE * HIDDEN_SIZE + HIDDEN_SIZE * 2 * D2)
    cost = pl.CostEstimate(
        flops=(mlp_flops_per_row + 12 * D2) * n_pad,
        transcendentals=3 * D2 * n_pad + D2,                # tanh(s), tanh(t), log; exp once
        bytes_accessed=(2 * INPUT_SIZE + 1) * 4 * n_pad,
    )

    # Constant weights/biases: index_map -> (0, 0) so they stay VMEM-resident.
    const = lambda shape: pl.BlockSpec(shape, lambda i: (0, 0))

    outT, logdetT = pl.pallas_call(
        affine_coupling_kernel,
        out_shape=(
            jax.ShapeDtypeStruct((INPUT_SIZE, n_pad), jnp.float32),
            jax.ShapeDtypeStruct((1, n_pad), jnp.float32),
        ),
        grid=grid,
        in_specs=[
            pl.BlockSpec((INPUT_SIZE, tile), lambda i: (0, i)),   # xT
            const((H0_OUT, NET_IN)), const((H0_OUT, 1)),          # w0, b0
            const((HIDDEN_SIZE, H0_OUT)), const((HIDDEN_SIZE, 1)),  # w1, b1
            const((HIDDEN_SIZE, HIDDEN_SIZE)), const((HIDDEN_SIZE, 1)),  # w2, b2
            const((2 * D2, HIDDEN_SIZE)), const((2 * D2, 1)),     # w3, b3
            const((D2, 1)),                                       # log_beta
        ],
        out_specs=(
            pl.BlockSpec((INPUT_SIZE, tile), lambda i: (0, i)),
            pl.BlockSpec((1, tile), lambda i: (0, i)),
        ),
        compiler_params=pltpu.CompilerParams(
            dimension_semantics=("parallel",),   # megacore sharding on v7x
        ),
        cost_estimate=cost,
    )(
        xT,
        params["w0"], params["b0"],
        params["w1"], params["b1"],
        params["w2"], params["b2"],
        params["w3"], params["b3"],
        params["log_beta"],
    )

    out = outT[:, :n].T                    # back to (N, INPUT_SIZE)
    logdet = logdetT[0, :n]                # (N,)
    return out, logdet


# ---------------------------------------------------------------------------
# Deterministic synthetic init.  Weights stored (out, in) (PyTorch-native
# orientation, which is also what the transposed kernel consumes directly);
# biases / log_beta stored as column vectors (out, 1).
# ---------------------------------------------------------------------------
def init_params(key):
    ks = jax.random.split(key, 8)

    def lin(kw, kb, fan_in, fan_out):
        bound = 1.0 / jnp.sqrt(fan_in)
        w = jax.random.uniform(kw, (fan_out, fan_in), jnp.float32, -bound, bound)
        b = jax.random.uniform(kb, (fan_out, 1), jnp.float32, -bound, bound)
        return w, b

    w0, b0 = lin(ks[0], ks[1], NET_IN, H0_OUT)
    w1, b1 = lin(ks[2], ks[3], H0_OUT, HIDDEN_SIZE)
    w2, b2 = lin(ks[4], ks[5], HIDDEN_SIZE, HIDDEN_SIZE)     # the single n_hidden layer
    w3, b3 = lin(ks[6], ks[7], HIDDEN_SIZE, 2 * D2)
    log_beta = jnp.zeros((D2, 1), jnp.float32)               # nn.Parameter(zeros) in torch
    return dict(w0=w0, b0=b0, w1=w1, b1=b1, w2=w2, b2=b2, w3=w3, b3=b3,
                log_beta=log_beta)


def reference_forward(x, p):
    """Pure-JAX reference mirroring the PyTorch forward (for sanity check)."""
    x1, x2 = x[:, :SPLIT_SIZE], x[:, SPLIT_SIZE:]
    h = jnp.maximum(x1 @ p["w0"].T + p["b0"][:, 0], 0.0)
    h = jnp.maximum(h @ p["w1"].T + p["b1"][:, 0], 0.0)
    h = jnp.maximum(h @ p["w2"].T + p["b2"][:, 0], 0.0)
    h = h @ p["w3"].T + p["b3"][:, 0]
    s, t = h[:, :D2], h[:, D2:]
    beta = jnp.exp(jnp.clip(p["log_beta"][:, 0], -5.0, 5.0))
    u2 = x2 + (ALPHA * x2 * jnp.tanh(s) + beta * jnp.tanh(t))
    out = jnp.concatenate([x1, u2], axis=-1)
    logdet = jnp.sum(jnp.log(1.0 + ALPHA * jnp.tanh(s)), axis=1)
    return out, logdet


if __name__ == "__main__":
    key = jax.random.PRNGKey(0)
    kx, kp, kx2 = jax.random.split(key, 3)
    params = init_params(kp)

    # Small main example (single tile).
    N = 8
    x = jax.random.normal(kx, (N, INPUT_SIZE), jnp.float32)
    out, logdet = affine_coupling_forward(x, params)
    out = jax.block_until_ready(out)
    logdet = jax.block_until_ready(logdet)
    ref_out, ref_logdet = reference_forward(x, params)
    assert out.shape == (N, INPUT_SIZE) and logdet.shape == (N,)
    assert jnp.allclose(out, ref_out, atol=1e-5, rtol=1e-5)
    assert jnp.allclose(logdet, ref_logdet, atol=1e-5, rtol=1e-5)

    # Tail / multi-tile check: N not a multiple of the tile, grid > 1.
    N2 = 300
    x2 = jax.random.normal(kx2, (N2, INPUT_SIZE), jnp.float32)
    out2, logdet2 = affine_coupling_forward(x2, params, tile_n=128)
    out2 = jax.block_until_ready(out2)
    logdet2 = jax.block_until_ready(logdet2)
    ref_out2, ref_logdet2 = reference_forward(x2, params)
    assert out2.shape == (N2, INPUT_SIZE) and logdet2.shape == (N2,)
    assert jnp.allclose(out2, ref_out2, atol=1e-5, rtol=1e-5)
    assert jnp.allclose(logdet2, ref_logdet2, atol=1e-5, rtol=1e-5)

    print("KERNEL_OK")
</pallas_src>

<mosaic_0001>
module attributes {stable_mosaic.version = 11 : i64} {
  func.func @affine_coupling_kernel(%arg0: i32, %arg1: memref<8x128xf32, #tpu.memory_space<vmem>>, %arg2: memref<36x4xf32, #tpu.memory_space<vmem>>, %arg3: memref<36x1xf32, #tpu.memory_space<vmem>>, %arg4: memref<32x36xf32, #tpu.memory_space<vmem>>, %arg5: memref<32x1xf32, #tpu.memory_space<vmem>>, %arg6: memref<32x32xf32, #tpu.memory_space<vmem>>, %arg7: memref<32x1xf32, #tpu.memory_space<vmem>>, %arg8: memref<8x32xf32, #tpu.memory_space<vmem>>, %arg9: memref<8x1xf32, #tpu.memory_space<vmem>>, %arg10: memref<4x1xf32, #tpu.memory_space<vmem>>, %arg11: memref<8x128xf32, #tpu.memory_space<vmem>>, %arg12: memref<1x128xf32, #tpu.memory_space<vmem>>) attributes {dimension_semantics = [#tpu.dimension_semantics<parallel>], iteration_bounds = array<i64: 1>, scalar_prefetch = 0 : i64, scratch_operands = 0 : i64, tpu.core_type = #tpu.core_type<tc>, window_params = [{transform_indices = @transform_0, window_bounds = array<i64: 8, 128>}, {pipeline_mode = #tpu.pipeline_mode<synchronous>, transform_indices = @transform_1, window_bounds = array<i64: 36, 4>}, {pipeline_mode = #tpu.pipeline_mode<synchronous>, transform_indices = @transform_2, window_bounds = array<i64: 36, 1>}, {pipeline_mode = #tpu.pipeline_mode<synchronous>, transform_indices = @transform_3, window_bounds = array<i64: 32, 36>}, {pipeline_mode = #tpu.pipeline_mode<synchronous>, transform_indices = @transform_4, window_bounds = array<i64: 32, 1>}, {pipeline_mode = #tpu.pipeline_mode<synchronous>, transform_indices = @transform_5, window_bounds = array<i64: 32, 32>}, {pipeline_mode = #tpu.pipeline_mode<synchronous>, transform_indices = @transform_6, window_bounds = array<i64: 32, 1>}, {pipeline_mode = #tpu.pipeline_mode<synchronous>, transform_indices = @transform_7, window_bounds = array<i64: 8, 32>}, {pipeline_mode = #tpu.pipeline_mode<synchronous>, transform_indices = @transform_8, window_bounds = array<i64: 8, 1>}, {pipeline_mode = #tpu.pipeline_mode<synchronous>, transform_indices = @transform_9, window_bounds = array<i64: 4, 1>}, {transform_indices = @transform_10, window_bounds = array<i64: 8, 128>}, {transform_indices = @transform_11, window_bounds = array<i64: 1, 128>}]} {
    %c0 = arith.constant 0 : index
    %c0_0 = arith.constant 0 : index
    %0 = vector.load %arg1[%c0, %c0_0] : memref<8x128xf32, #tpu.memory_space<vmem>>, vector<8x128xf32>
    %1 = vector.extract_strided_slice %0 {offsets = [0, 0], sizes = [4, 128], strides = [1, 1]} : vector<8x128xf32> to vector<4x128xf32>
    %2 = vector.extract_strided_slice %0 {offsets = [4, 0], sizes = [4, 128], strides = [1, 1]} : vector<8x128xf32> to vector<4x128xf32>
    %c0_1 = arith.constant 0 : index
    %c0_2 = arith.constant 0 : index
    %3 = vector.load %arg2[%c0_1, %c0_2] : memref<36x4xf32, #tpu.memory_space<vmem>>, vector<36x4xf32>
    %cst = arith.constant dense<0.000000e+00> : vector<36x128xf32>
    %4 = tpu.matmul %3, %1, %cst {dimension_numbers = #tpu.dot_dimension_numbers<[1], [0], [0], [1], [0, 0, 1, 1], [], []>} : vector<36x4xf32>, vector<4x128xf32>, vector<36x128xf32> -> vector<36x128xf32>
    %c0_3 = arith.constant 0 : index
    %c0_4 = arith.constant 0 : index
    %5 = vector.load %arg3[%c0_3, %c0_4] : memref<36x1xf32, #tpu.memory_space<vmem>>, vector<36x1xf32>
    %6 = vector.broadcast %5 : vector<36x1xf32> to vector<36x128xf32>
    %7 = arith.addf %4, %6 : vector<36x128xf32>
    %cst_5 = arith.constant 0.000000e+00 : f32
    %8 = vector.broadcast %cst_5 : f32 to vector<36x128xf32>
    %9 = arith.maximumf %7, %8 : vector<36x128xf32>
    %c0_6 = arith.constant 0 : index
    %c0_7 = arith.constant 0 : index
    %10 = vector.load %arg4[%c0_6, %c0_7] : memref<32x36xf32, #tpu.memory_space<vmem>>, vector<32x36xf32>
    %cst_8 = arith.constant dense<0.000000e+00> : vector<32x128xf32>
    %11 = tpu.matmul %10, %9, %cst_8 {dimension_numbers = #tpu.dot_dimension_numbers<[1], [0], [0], [1], [0, 0, 1, 1], [], []>} : vector<32x36xf32>, vector<36x128xf32>, vector<32x128xf32> -> vector<32x128xf32>
    %c0_9 = arith.constant 0 : index
    %c0_10 = arith.constant 0 : index
    %12 = vector.load %arg5[%c0_9, %c0_10] : memref<32x1xf32, #tpu.memory_space<vmem>>, vector<32x1xf32>
    %13 = vector.broadcast %12 : vector<32x1xf32> to vector<32x128xf32>
    %14 = arith.addf %11, %13 : vector<32x128xf32>
    %cst_11 = arith.constant 0.000000e+00 : f32
    %15 = vector.broadcast %cst_11 : f32 to vector<32x128xf32>
    %16 = arith.maximumf %14, %15 : vector<32x128xf32>
    %c0_12 = arith.constant 0 : index
    %c0_13 = arith.constant 0 : index
    %17 = vector.load %arg6[%c0_12, %c0_13] : memref<32x32xf32, #tpu.memory_space<vmem>>, vector<32x32xf32>
    %cst_14 = arith.constant dense<0.000000e+00> : vector<32x128xf32>
    %18 = tpu.matmul %17, %16, %cst_14 {dimension_numbers = #tpu.dot_dimension_numbers<[1], [0], [0], [1], [0, 0, 1, 1], [], []>} : vector<32x32xf32>, vector<32x128xf32>, vector<32x128xf32> -> vector<32x128xf32>
    %c0_15 = arith.constant 0 : index
    %c0_16 = arith.constant 0 : index
    %19 = vector.load %arg7[%c0_15, %c0_16] : memref<32x1xf32, #tpu.memory_space<vmem>>, vector<32x1xf32>
    %20 = vector.broadcast %19 : vector<32x1xf32> to vector<32x128xf32>
    %21 = arith.addf %18, %20 : vector<32x128xf32>
    %cst_17 = arith.constant 0.000000e+00 : f32
    %22 = vector.broadcast %cst_17 : f32 to vector<32x128xf32>
    %23 = arith.maximumf %21, %22 : vector<32x128xf32>
    %c0_18 = arith.constant 0 : index
    %c0_19 = arith.constant 0 : index
    %24 = vector.load %arg8[%c0_18, %c0_19] : memref<8x32xf32, #tpu.memory_space<vmem>>, vector<8x32xf32>
    %cst_20 = arith.constant dense<0.000000e+00> : vector<8x128xf32>
    %25 = tpu.matmul %24, %23, %cst_20 {dimension_numbers = #tpu.dot_dimension_numbers<[1], [0], [0], [1], [0, 0, 1, 1], [], []>} : vector<8x32xf32>, vector<32x128xf32>, vector<8x128xf32> -> vector<8x128xf32>
    %c0_21 = arith.constant 0 : index
    %c0_22 = arith.constant 0 : index
    %26 = vector.load %arg9[%c0_21, %c0_22] : memref<8x1xf32, #tpu.memory_space<vmem>>, vector<8x1xf32>
    %27 = vector.broadcast %26 : vector<8x1xf32> to vector<8x128xf32>
    %28 = arith.addf %25, %27 : vector<8x128xf32>
    %29 = vector.extract_strided_slice %28 {offsets = [0, 0], sizes = [4, 128], strides = [1, 1]} : vector<8x128xf32> to vector<4x128xf32>
    %30 = vector.extract_strided_slice %28 {offsets = [4, 0], sizes = [4, 128], strides = [1, 1]} : vector<8x128xf32> to vector<4x128xf32>
    %31 = math.tanh %29 : vector<4x128xf32>
    %32 = math.tanh %30 : vector<4x128xf32>
    %c0_23 = arith.constant 0 : index
    %c0_24 = arith.constant 0 : index
    %33 = vector.load %arg10[%c0_23, %c0_24] : memref<4x1xf32, #tpu.memory_space<vmem>>, vector<4x1xf32>
    %cst_25 = arith.constant -5.000000e+00 : f32
    %cst_26 = arith.constant 5.000000e+00 : f32
    %34 = vector.broadcast %cst_25 : f32 to vector<4x1xf32>
    %35 = arith.maximumf %34, %33 : vector<4x1xf32>
    %36 = vector.broadcast %cst_26 : f32 to vector<4x1xf32>
    %37 = arith.minimumf %36, %35 : vector<4x1xf32>
    %38 = math.exp %37 : vector<4x1xf32>
    %cst_27 = arith.constant 6.000000e-01 : f32
    %39 = vector.broadcast %cst_27 : f32 to vector<4x128xf32>
    %40 = arith.mulf %39, %2 : vector<4x128xf32>
    %41 = arith.mulf %40, %31 : vector<4x128xf32>
    %42 = vector.broadcast %38 : vector<4x1xf32> to vector<4x128xf32>
    %43 = arith.mulf %42, %32 : vector<4x128xf32>
    %44 = arith.addf %41, %43 : vector<4x128xf32>
    %45 = arith.addf %2, %44 : vector<4x128xf32>
    %c0_28 = arith.constant 0 : index
    %c0_29 = arith.constant 0 : index
    %46 = vector.load %arg11[%c0_28, %c0_29] : memref<8x128xf32, #tpu.memory_space<vmem>>, vector<4x128xf32>
    tpu.vector_store %arg11[%c0_28, %c0_29], %1 {strides = array<i32>} : memref<8x128xf32, #tpu.memory_space<vmem>>, vector<4x128xf32>,
    %c4 = arith.constant 4 : index
    %c0_30 = arith.constant 0 : index
    %47 = vector.load %arg11[%c4, %c0_30] : memref<8x128xf32, #tpu.memory_space<vmem>>, vector<4x128xf32>
    tpu.vector_store %arg11[%c4, %c0_30], %45 {strides = array<i32>} : memref<8x128xf32, #tpu.memory_space<vmem>>, vector<4x128xf32>,
    %cst_31 = arith.constant 6.000000e-01 : f32
    %48 = vector.broadcast %cst_31 : f32 to vector<4x128xf32>
    %49 = arith.mulf %48, %31 : vector<4x128xf32>
    %cst_32 = arith.constant 1.000000e+00 : f32
    %50 = vector.broadcast %cst_32 : f32 to vector<4x128xf32>
    %51 = arith.addf %50, %49 : vector<4x128xf32>
    %52 = math.log %51 : vector<4x128xf32>
    %cst_33 = arith.constant dense<0.000000e+00> : vector<128xf32>
    %53 = vector.multi_reduction <add>, %52, %cst_33 [0] : vector<4x128xf32> to vector<128xf32>
    %54 = vector.shape_cast %53 : vector<128xf32> to vector<1x128xf32>
    %c0_34 = arith.constant 0 : index
    %c0_35 = arith.constant 0 : index
    %55 = vector.load %arg12[%c0_34, %c0_35] : memref<1x128xf32, #tpu.memory_space<vmem>>, vector<1x128xf32>
    tpu.vector_store %arg12[%c0_34, %c0_35], %54 {strides = array<i32>} : memref<1x128xf32, #tpu.memory_space<vmem>>, vector<1x128xf32>,
    return
  }
  func.func @transform_0(%arg0: i32) -> (i32, i32) {
    %c0_i32 = arith.constant 0 : i32
    %c0_i32_0 = arith.constant 0 : i32
    return %c0_i32, %arg0 : i32, i32
  }
  func.func @transform_1(%arg0: i32) -> (i32, i32) {
    %c0_i32 = arith.constant 0 : i32
    %c0_i32_0 = arith.constant 0 : i32
    %c0_i32_1 = arith.constant 0 : i32
    return %c0_i32, %c0_i32_0 : i32, i32
  }
  func.func @transform_2(%arg0: i32) -> (i32, i32) {
    %c0_i32 = arith.constant 0 : i32
    %c0_i32_0 = arith.constant 0 : i32
    %c0_i32_1 = arith.constant 0 : i32
    return %c0_i32, %c0_i32_0 : i32, i32
  }
  func.func @transform_3(%arg0: i32) -> (i32, i32) {
    %c0_i32 = arith.constant 0 : i32
    %c0_i32_0 = arith.constant 0 : i32
    %c0_i32_1 = arith.constant 0 : i32
    return %c0_i32, %c0_i32_0 : i32, i32
  }
  func.func @transform_4(%arg0: i32) -> (i32, i32) {
    %c0_i32 = arith.constant 0 : i32
    %c0_i32_0 = arith.constant 0 : i32
    %c0_i32_1 = arith.constant 0 : i32
    return %c0_i32, %c0_i32_0 : i32, i32
  }
  func.func @transform_5(%arg0: i32) -> (i32, i32) {
    %c0_i32 = arith.constant 0 : i32
    %c0_i32_0 = arith.constant 0 : i32
    %c0_i32_1 = arith.constant 0 : i32
    return %c0_i32, %c0_i32_0 : i32, i32
  }
  func.func @transform_6(%arg0: i32) -> (i32, i32) {
    %c0_i32 = arith.constant 0 : i32
    %c0_i32_0 = arith.constant 0 : i32
    %c0_i32_1 = arith.constant 0 : i32
    return %c0_i32, %c0_i32_0 : i32, i32
  }
  func.func @transform_7(%arg0: i32) -> (i32, i32) {
    %c0_i32 = arith.constant 0 : i32
    %c0_i32_0 = arith.constant 0 : i32
    %c0_i32_1 = arith.constant 0 : i32
    return %c0_i32, %c0_i32_0 : i32, i32
  }
  func.func @transform_8(%arg0: i32) -> (i32, i32) {
    %c0_i32 = arith.constant 0 : i32
    %c0_i32_0 = arith.constant 0 : i32
    %c0_i32_1 = arith.constant 0 : i32
    return %c0_i32, %c0_i32_0 : i32, i32
  }
  func.func @transform_9(%arg0: i32) -> (i32, i32) {
    %c0_i32 = arith.constant 0 : i32
    %c0_i32_0 = arith.constant 0 : i32
    %c0_i32_1 = arith.constant 0 : i32
    return %c0_i32, %c0_i32_0 : i32, i32
  }
  func.func @transform_10(%arg0: i32) -> (i32, i32) {
    %c0_i32 = arith.constant 0 : i32
    %c0_i32_0 = arith.constant 0 : i32
    return %c0_i32, %arg0 : i32, i32
  }
  func.func @transform_11(%arg0: i32) -> (i32, i32) {
    %c0_i32 = arith.constant 0 : i32
    %c0_i32_0 = arith.constant 0 : i32
    return %c0_i32, %arg0 : i32, i32
  }
}

</mosaic_0001>

<llo_original>
// kernel: tpu_custom_call.1
$region0: #{tpu_custom_call.1}
  #allocation0 [shape = 'u32[]', space=smem, size = 0x4, offset = 0x4, fixed_abs, tag = 'smem constant byte address 0x4 - core index']
  #allocation1 [shape = 'u32[72,128]{1,0:T(1,128)}', space=vmem, size = 0x9000, scoped, tag = 'internal scratch']
  %s0 = inlined_call_operand.vmem [shape: f32[8,128], index: 0, kind: input, shape index: {}]
  %s1 = inlined_call_operand.vmem [shape: f32[36,4], index: 1, kind: input, shape index: {}]
  %s2 = inlined_call_operand.vmem [shape: f32[36,1], index: 2, kind: input, shape index: {}]
  %s3 = inlined_call_operand.vmem [shape: f32[32,36], index: 3, kind: input, shape index: {}]
  %s4 = inlined_call_operand.vmem [shape: f32[32,1], index: 4, kind: input, shape index: {}]
  %s5 = inlined_call_operand.vmem [shape: f32[32,32], index: 5, kind: input, shape index: {}]
  %s6 = inlined_call_operand.vmem [shape: f32[32,1], index: 6, kind: input, shape index: {}]
  %s7 = inlined_call_operand.vmem [shape: f32[8,32], index: 7, kind: input, shape index: {}]
  %s8 = inlined_call_operand.vmem [shape: f32[8,1], index: 8, kind: input, shape index: {}]
  %s9 = inlined_call_operand.vmem [shape: f32[4,1], index: 9, kind: input, shape index: {}]
  %s10 = inlined_call_operand.hbm [shape: f32[8,128], index: 10, kind: output, shape index: {0}]
  %s11 = inlined_call_operand.hbm [shape: f32[1,128], index: 11, kind: output, shape index: {1}]
  %12 = xla_tuple %s10, %s11
  %s13 = sld [smem:[#allocation0]]
  $region58: #{tpu_custom_call.1} parent=0
    _
  %s15 = ssub.s32 1, %s13
  %s16 = scalar_select 0, %s15, %s13
  $region1: #{tpu_custom_call.1} parent=0
    #allocation2 [shape = 'u8[4096]{0}', space=vmem, size = 0x1000, scoped, tag = 'output window, operand 0, single buffered']
    #allocation3 [shape = 's32[1]{0}', space=sflag, size = 0x4, scoped, tag = 'scoped memory for tpu_custom_call.1']
    #allocation4 [shape = 'u8[512]{0}', space=vmem, size = 0x400, scoped, tag = 'output window, operand 1, single buffered']
    #allocation5 [shape = 's32[1]{0}', space=sflag, size = 0x4, scoped, tag = 'scoped memory for tpu_custom_call.1']
    %17 = vsyncpa [#allocation3], 0
    %18 = vsyncpa [#allocation5], 0
    // Predicated region
    $region2: #{tpu_custom_call.1} parent=1 // pred_check
      _
    $region3: #{tpu_custom_call.1} parent=1 // pred_check_branch
      %20 = sbr.rel (0) target = $region5
    $region4: #{tpu_custom_call.1} parent=1 // pred_region
      _
    $region5: #{tpu_custom_call.1} parent=1 // pred_fallthru
      _
    // Predicated region
    $region6: #{tpu_custom_call.1} parent=1 // pred_check
      _
    $region7: #{tpu_custom_call.1} parent=1 // pred_check_branch
      %22 = sbr.rel (0) target = $region9
    $region8: #{tpu_custom_call.1} parent=1 // pred_region
      _
    $region9: #{tpu_custom_call.1} parent=1 // pred_fallthru
      _
    // Predicated region
    $region10: #{tpu_custom_call.1} parent=1 // pred_check
      _
    $region11: #{tpu_custom_call.1} parent=1 // pred_check_branch
      %24 = sbr.rel (0) target = $region13
    $region12: #{tpu_custom_call.1} parent=1 // pred_region
      _
    $region13: #{tpu_custom_call.1} parent=1 // pred_fallthru
      _
    // Predicated region
    $region14: #{tpu_custom_call.1} parent=1 // pred_check
      _
    $region15: #{tpu_custom_call.1} parent=1 // pred_check_branch
      %26 = sbr.rel (0) target = $region17
    $region16: #{tpu_custom_call.1} parent=1 // pred_region
      _
    $region17: #{tpu_custom_call.1} parent=1 // pred_fallthru
      _
    // Predicated region
    $region18: #{tpu_custom_call.1} parent=1 // pred_check
      _
    $region19: #{tpu_custom_call.1} parent=1 // pred_check_branch
      %28 = sbr.rel (0) target = $region21
    $region20: #{tpu_custom_call.1} parent=1 // pred_region
      _
    $region21: #{tpu_custom_call.1} parent=1 // pred_fallthru
      _
    // Predicated region
    $region22: #{tpu_custom_call.1} parent=1 // pred_check
      _
    $region23: #{tpu_custom_call.1} parent=1 // pred_check_branch
      %30 = sbr.rel (0) target = $region25
    $region24: #{tpu_custom_call.1} parent=1 // pred_region
      _
    $region25: #{tpu_custom_call.1} parent=1 // pred_fallthru
      _
    // Predicated region
    $region26: #{tpu_custom_call.1} parent=1 // pred_check
      _
    $region27: #{tpu_custom_call.1} parent=1 // pred_check_branch
      %32 = sbr.rel (0) target = $region29
    $region28: #{tpu_custom_call.1} parent=1 // pred_region
      _
    $region29: #{tpu_custom_call.1} parent=1 // pred_fallthru
      _
    // Predicated region
    $region30: #{tpu_custom_call.1} parent=1 // pred_check
      _
    $region31: #{tpu_custom_call.1} parent=1 // pred_check_branch
      %34 = sbr.rel (0) target = $region33
    $region32: #{tpu_custom_call.1} parent=1 // pred_region
      _
    $region33: #{tpu_custom_call.1} parent=1 // pred_fallthru
      _
    // Predicated region
    $region34: #{tpu_custom_call.1} parent=1 // pred_check
      _
    $region35: #{tpu_custom_call.1} parent=1 // pred_check_branch
      %36 = sbr.rel (0) target = $region37
    $region36: #{tpu_custom_call.1} parent=1 // pred_region
      _
    $region37: #{tpu_custom_call.1} parent=1 // pred_fallthru
      _
    // Predicated region
    $region38: #{tpu_custom_call.1} parent=1 // pred_check
      _
    $region39: #{tpu_custom_call.1} parent=1 // pred_check_branch
      %38 = sbr.rel (0) target = $region41
    $region40: #{tpu_custom_call.1} parent=1 // pred_region
      _
    $region41: #{tpu_custom_call.1} parent=1 // pred_fallthru
      _
    %v39 = vld [vmem:[%s0] sm:$0xff]
    %v40 = vld [vmem:[%s1] sm:$0xff]
    %v41 = vld [vmem:[%s1 + $0x8] sm:$0xff]
    %v42 = vld [vmem:[%s1 + $0x10] sm:$0xff]
    %v43 = vld [vmem:[%s1 + $0x18] sm:$0xff]
    %v44 = vld [vmem:[%s1 + $0x20] sm:$0xf]
    %v45 = vld [vmem:[%s2] sm:$0xff]
    %v46 = vld [vmem:[%s2 + $0x8] sm:$0xff]
    %v47 = vld [vmem:[%s2 + $0x10] sm:$0xff]
    %v48 = vld [vmem:[%s2 + $0x18] sm:$0xff]
    %v49 = vld [vmem:[%s2 + $0x20] sm:$0xf]
    %51 = vset.pattern.permute.xlu0 0
    %52 = vperm.xlu0 %51, %v45
    %v53 = vpop.permute.xlu0 %52
    %56 = vset.pattern.permute.xlu0 0
    %57 = vperm.xlu0 %56, %v46
    %v58 = vpop.permute.xlu0 %57
    %61 = vset.pattern.permute.xlu0 0
    %62 = vperm.xlu0 %61, %v47
    %v63 = vpop.permute.xlu0 %62
    %66 = vset.pattern.permute.xlu0 0
    %67 = vperm.xlu0 %66, %v48
    %v68 = vpop.permute.xlu0 %67
    %71 = vset.pattern.permute.xlu0 0
    %72 = vperm.xlu0 %71, %v49
    %v73 = vpop.permute.xlu0 %72
    %vm75 = vcmask 31744
    %v77 = vsel %vm75, %v40, 0
    %v80 = vsel %vm75, %v41, 0
    %v83 = vsel %vm75, %v42, 0
    %v86 = vsel %vm75, %v43, 0
    %v89 = vsel %vm75, %v44, 0
    %vm91 = vcmask 1043456
    %v93 = vsel %vm91, %v39, 0
    %95 = vmatpush.msra.mxu0 0.0
    %96 = vmatpush.msra.mxu0 0.0
    %97 = vmatpush.msra.mxu0 0.0
    %98 = vmatpush.msra.mxu0 0.0
    %99 = vmatpush.msra.mxu0 0.0
    %100 = vmatpush.msra.mxu0 0.0
    %101 = vmatpush.msra.mxu0 0.0
    %102 = vmatpush.msra.mxu0 0.0
    %103 = vmatpush.msra.mxu0 0.0
    %104 = vmatpush.msra.mxu0 0.0
    %105 = vmatpush.msra.mxu0 0.0
    %106 = vmatpush.msra.mxu0 0.0
    %107 = vmatpush.msra.mxu0 0.0
    %108 = vmatpush.msra.mxu0 0.0
    %109 = vmatpush.msra.mxu0 0.0
    %110 = vmatpush.msra.mxu0 %v93
    %111 = vmatmul.f32.gmra.mxu0 %v77
    %v112 = vpop.f32.mrf.mxu0
    %v113 = vadd.f32 %v53, %v112
    %114 = vmatmul.f32.gmra.mxu0 %v80
    %v115 = vpop.f32.mrf.mxu0
    %v116 = vadd.f32 %v58, %v115
    %117 = vmatmul.f32.gmra.mxu0 %v83
    %v118 = vpop.f32.mrf.mxu0
    %v119 = vadd.f32 %v63, %v118
    %120 = vmatmul.f32.gmra.mxu0 %v86
    %v121 = vpop.f32.mrf.mxu0
    %v122 = vadd.f32 %v68, %v121
    %123 = vmatmul.f32.gmra.mxu0 %v89
    %v124 = vpop.f32.mrf.mxu0
    %v125 = vadd.f32 %v73, %v124
    %126 = vdwg.mxu0
    %v127 = vmax.f32 %v113, 0.0
    %v128 = vmax.f32 %v116, 0.0
    %v129 = vmax.f32 %v119, 0.0
    %v130 = vmax.f32 %v122, 0.0
    %v131 = vmax.f32 %v125, 0.0
    %v132 = vld [vmem:[%s3] sm:$0xff]
    %v133 = vld [vmem:[%s3 + $0x8] sm:$0xff]
    %v134 = vld [vmem:[%s3 + $0x10] sm:$0xff]
    %v135 = vld [vmem:[%s3 + $0x18] sm:$0xff]
    %v136 = vld [vmem:[%s4] sm:$0xff]
    %v137 = vld [vmem:[%s4 + $0x8] sm:$0xff]
    %v138 = vld [vmem:[%s4 + $0x10] sm:$0xff]
    %v139 = vld [vmem:[%s4 + $0x18] sm:$0xff]
    %141 = vset.pattern.permute.xlu0 0
    %142 = vperm.xlu0 %141, %v136
    %v143 = vpop.permute.xlu0 %142
    %146 = vset.pattern.permute.xlu0 0
    %147 = vperm.xlu0 %146, %v137
    %v148 = vpop.permute.xlu0 %147
    %151 = vset.pattern.permute.xlu0 0
    %152 = vperm.xlu0 %151, %v138
    %v153 = vpop.permute.xlu0 %152
    %156 = vset.pattern.permute.xlu0 0
    %157 = vperm.xlu0 %156, %v139
    %v158 = vpop.permute.xlu0 %157
    %vm160 = vcmask 293888
    %v162 = vsel %vm160, %v132, 0
    %v165 = vsel %vm160, %v133, 0
    %v168 = vsel %vm160, %v134, 0
    %v171 = vsel %vm160, %v135, 0
    %v174 = vsel %vm91, %v131, 0
    %176 = vmatpush.msra.mxu0 0.0
    %177 = vmatpush.msra.mxu0 0.0
    %178 = vmatpush.msra.mxu0 0.0
    %179 = vmatpush.msra.mxu0 0.0
    %180 = vmatpush.msra.mxu0 0.0
    %181 = vmatpush.msra.mxu0 0.0
    %182 = vmatpush.msra.mxu0 0.0
    %183 = vmatpush.msra.mxu0 0.0
    %184 = vmatpush.msra.mxu0 0.0
    %185 = vmatpush.msra.mxu0 0.0
    %186 = vmatpush.msra.mxu0 0.0
    %187 = vmatpush.msra.mxu0 %v174
    %188 = vmatpush.msra.mxu0 %v130
    %189 = vmatpush.msra.mxu0 %v129
    %190 = vmatpush.msra.mxu0 %v128
    %191 = vmatpush.msra.mxu0 %v127
    %192 = vmatmul.f32.gmra.mxu0 %v162
    %v193 = vpop.f32.mrf.mxu0
    %v194 = vadd.f32 %v143, %v193
    %195 = vmatmul.f32.gmra.mxu0 %v165
    %v196 = vpop.f32.mrf.mxu0
    %v197 = vadd.f32 %v148, %v196
    %198 = vmatmul.f32.gmra.mxu0 %v168
    %v199 = vpop.f32.mrf.mxu0
    %v200 = vadd.f32 %v153, %v199
    %201 = vmatmul.f32.gmra.mxu0 %v171
    %v202 = vpop.f32.mrf.mxu0
    %v203 = vadd.f32 %v158, %v202
    %204 = vdwg.mxu0
    %v205 = vmax.f32 %v194, 0.0
    %v206 = vmax.f32 %v197, 0.0
    %v207 = vmax.f32 %v200, 0.0
    %v208 = vmax.f32 %v203, 0.0
    %v209 = vld [vmem:[%s5] sm:$0xff]
    %v210 = vld [vmem:[%s5 + $0x8] sm:$0xff]
    %v211 = vld [vmem:[%s5 + $0x10] sm:$0xff]
    %v212 = vld [vmem:[%s5 + $0x18] sm:$0xff]
    %v213 = vld [vmem:[%s6] sm:$0xff]
    %v214 = vld [vmem:[%s6 + $0x8] sm:$0xff]
    %v215 = vld [vmem:[%s6 + $0x10] sm:$0xff]
    %v216 = vld [vmem:[%s6 + $0x18] sm:$0xff]
    %218 = vset.pattern.permute.xlu0 0
    %219 = vperm.xlu0 %218, %v213
    %v220 = vpop.permute.xlu0 %219
    %223 = vset.pattern.permute.xlu0 0
    %224 = vperm.xlu0 %223, %v214
    %v225 = vpop.permute.xlu0 %224
    %228 = vset.pattern.permute.xlu0 0
    %229 = vperm.xlu0 %228, %v215
    %v230 = vpop.permute.xlu0 %229
    %233 = vset.pattern.permute.xlu0 0
    %234 = vperm.xlu0 %233, %v216
    %v235 = vpop.permute.xlu0 %234
    %vm237 = vcmask 261120
    %v239 = vsel %vm237, %v209, 0
    %v242 = vsel %vm237, %v210, 0
    %v245 = vsel %vm237, %v211, 0
    %v248 = vsel %vm237, %v212, 0
    %250 = vmatpush.msra.mxu0 0.0
    %251 = vmatpush.msra.mxu0 0.0
    %252 = vmatpush.msra.mxu0 0.0
    %253 = vmatpush.msra.mxu0 0.0
    %254 = vmatpush.msra.mxu0 0.0
    %255 = vmatpush.msra.mxu0 0.0
    %256 = vmatpush.msra.mxu0 0.0
    %257 = vmatpush.msra.mxu0 0.0
    %258 = vmatpush.msra.mxu0 0.0
    %259 = vmatpush.msra.mxu0 0.0
    %260 = vmatpush.msra.mxu0 0.0
    %261 = vmatpush.msra.mxu0 0.0
    %262 = vmatpush.msra.mxu0 %v208
    %263 = vmatpush.msra.mxu0 %v207
    %264 = vmatpush.msra.mxu0 %v206
    %265 = vmatpush.msra.mxu0 %v205
    %266 = vmatmul.f32.gmra.mxu0 %v239
    %v267 = vpop.f32.mrf.mxu0
    %v268 = vadd.f32 %v220, %v267
    %269 = vmatmul.f32.gmra.mxu0 %v242
    %v270 = vpop.f32.mrf.mxu0
    %v271 = vadd.f32 %v225, %v270
    %272 = vmatmul.f32.gmra.mxu0 %v245
    %v273 = vpop.f32.mrf.mxu0
    %v274 = vadd.f32 %v230, %v273
    %275 = vmatmul.f32.gmra.mxu0 %v248
    %v276 = vpop.f32.mrf.mxu0
    %v277 = vadd.f32 %v235, %v276
    %278 = vdwg.mxu0
    %v279 = vmax.f32 %v268, 0.0
    %v280 = vmax.f32 %v271, 0.0
    %v281 = vmax.f32 %v274, 0.0
    %v282 = vmax.f32 %v277, 0.0
    %v283 = vld [vmem:[%s7] sm:$0xff]
    %v284 = vld [vmem:[%s8] sm:$0xff]
    %286 = vset.pattern.permute.xlu0 0
    %287 = vperm.xlu0 %286, %v284
    %v288 = vpop.permute.xlu0 %287
    %v291 = vsel %vm237, %v283, 0
    %293 = vmatpush.msra.mxu0 0.0
    %294 = vmatpush.msra.mxu0 0.0
    %295 = vmatpush.msra.mxu0 0.0
    %296 = vmatpush.msra.mxu0 0.0
    %297 = vmatpush.msra.mxu0 0.0
    %298 = vmatpush.msra.mxu0 0.0
    %299 = vmatpush.msra.mxu0 0.0
    %300 = vmatpush.msra.mxu0 0.0
    %301 = vmatpush.msra.mxu0 0.0
    %302 = vmatpush.msra.mxu0 0.0
    %303 = vmatpush.msra.mxu0 0.0
    %304 = vmatpush.msra.mxu0 0.0
    %305 = vmatpush.msra.mxu0 %v282
    %306 = vmatpush.msra.mxu0 %v281
    %307 = vmatpush.msra.mxu0 %v280
    %308 = vmatpush.msra.mxu0 %v279
    %309 = vmatmul.f32.gmra.mxu0 %v291
    %v310 = vpop.f32.mrf.mxu0
    %v311 = vadd.f32 %v288, %v310
    %312 = vdwg.mxu0
    %v313 = vtanh.pop %v311
    %v314 = vld [vmem:[%s9] sm:$0xf]
    %v315 = vmax.f32 %v314, -5.0
    %v316 = vmin.f32 %v315, 5.0
    %v317 = vmul.f32 %v316, 1.442695
    %v318 = vpow.pop %v317
    %v319 = vmul.f32 %v39, 0.6
    %v321 = vrot.slane %v313, 4
    %v323 = vmul.f32 %v319, %v321
    %325 = vset.pattern.permute.xlu0 0
    %326 = vperm.xlu0 %325, %v318
    %v327 = vpop.permute.xlu0 %326
    %v329 = vmul.f32 %v327, %v321
    %v331 = vrot.slane %v329, 4
    %v333 = vadd.f32 %v323, %v331
    %v334 = vadd.f32 %v39, %v333
    %335 = vst [vmem:[#allocation2] sm:$0xf] %v39
    %336 = vst [vmem:[#allocation2] sm:$0xf0] %v334
    %v337 = vmul.f32 %v313, 0.6
    %v338 = vadd.f32 %v337, 1.0
    %v339 = vlog2.pop %v338
    %v340 = vmul.f32 %v339, 0.6931472
    %v341 = vsel %vm91, %v340, 0.0
    %v342 = vrot.slane %v341, 4
    %v343 = vadd.f32 %v341, %v342
    %v344 = vrot.slane %v343, 2
    %v345 = vadd.f32 %v343, %v344
    %v346 = vrot.slane %v345, 1
    %v347 = vadd.f32 %v345, %v346
    %348 = vst [vmem:[#allocation4] sm:$0x1] %v347
    // Predicated region
    $region42: #{tpu_custom_call.1} parent=1 // pred_check
      _
    $region43: #{tpu_custom_call.1} parent=1 // pred_check_branch
      %350 = sbr.rel (0) target = $region45
    $region44: #{tpu_custom_call.1} parent=1 // pred_region
      %352 = vsyncadd [#allocation3], 0
      %s354 = sshll.u32 [#allocation2], 4
      %s355 = int_to_ptr.vmem [resolvable:$true] %s354
      %s356 = sshll.u32 %s10, 4
      %s357 = int_to_ptr.hbm [resolvable:$true] %s356
      %359 = dma.vmem_to_hbm [thread:$0]  %s355, 128, %s357, [#allocation3]
    $region45: #{tpu_custom_call.1} parent=1 // pred_fallthru
      _
    // Predicated region
    $region46: #{tpu_custom_call.1} parent=1 // pred_check
      _
    $region47: #{tpu_custom_call.1} parent=1 // pred_check_branch
      %361 = sbr.rel (0) target = $region49
    $region48: #{tpu_custom_call.1} parent=1 // pred_region
      %363 = vsyncadd [#allocation5], 0
      %s365 = sshll.u32 [#allocation4], 4
      %s366 = int_to_ptr.vmem [resolvable:$true] %s365
      %s367 = sshll.u32 %s11, 4
      %s368 = int_to_ptr.hbm [resolvable:$true] %s367
      %370 = dma.vmem_to_hbm [thread:$0]  %s366, 16, %s368, [#allocation5]
    $region49: #{tpu_custom_call.1} parent=1 // pred_fallthru
      _
    // Predicated region
    $region50: #{tpu_custom_call.1} parent=1 // pred_check
      _
    $region51: #{tpu_custom_call.1} parent=1 // pred_check_branch
      %372 = sbr.rel (0) target = $region53
    $region52: #{tpu_custom_call.1} parent=1 // pred_region
      %374 = dma.done [#allocation3], 128
    $region53: #{tpu_custom_call.1} parent=1 // pred_fallthru
      _
    // Predicated region
    $region54: #{tpu_custom_call.1} parent=1 // pred_check
      _
    $region55: #{tpu_custom_call.1} parent=1 // pred_check_branch
      %376 = sbr.rel (0) target = $region57
    $region56: #{tpu_custom_call.1} parent=1 // pred_region
      %378 = dma.done [#allocation5], 16
    $region57: #{tpu_custom_call.1} parent=1 // pred_fallthru
      _
    %379 = vsyncpa [#allocation3], 1
    %380 = vsyncpa [#allocation5], 1

</llo_original>
